<compile_context>
chip_gen: v7x
topology: tpu7x:2x2x1
jax: 0.10.0
libtpu: 0.0.40
codegen_flags: <defaults>
</compile_context>

<pallas_src>
import functools

import jax
import jax.numpy as jnp
from jax import lax
from jax.experimental import pallas as pl
from jax.experimental.pallas import tpu as pltpu


def _bigru_recurrence_kernel(gi_ref,     # (S, 3P) f32  precomputed input-path gates (biases folded)
                             h0_ref,     # (1, P)  f32  initial hidden [h_fwd | h_bwd | 0-pad]
                             w_hid_ref,  # (P, 3P) bf16 fused block-diag hidden weights (gate-major)
                             b_hn_ref,   # (1, P)  f32  n-gate hidden bias (cannot be folded: scaled by r)
                             out_ref,    # (S, P)  f32  per-step hidden slab, written back once
                             *, seq_len, padded_width, unroll):
    P = padded_width
    b_hn = b_hn_ref[...]                                   # (1, P), one vreg — hoist out of the loop

    def step(t, h):
        gi = gi_ref[pl.ds(t, 1), :]                        # (1, 3P) f32 (VMEM-resident slab)
        gh = jnp.dot(h.astype(jnp.bfloat16), w_hid_ref[...],
                     preferred_element_type=jnp.float32)   # (1, 3P) f32 — single MXU push per step
        # Lane-aligned gate blocks: [r | z | n], each P lanes, dirs packed as [fwd|bwd] within a block.
        r = jax.nn.sigmoid(gi[:, 0:P] + gh[:, 0:P])
        z = jax.nn.sigmoid(gi[:, P:2 * P] + gh[:, P:2 * P])
        n = jnp.tanh(gi[:, 2 * P:3 * P] + r * (gh[:, 2 * P:3 * P] + b_hn))
        h_new = (1.0 - z) * n + z * h                      # (1, P) f32; padded lanes stay 0
        out_ref[pl.ds(t, 1), :] = h_new                    # write into the VMEM-resident slab
        return h_new

    lax.fori_loop(0, seq_len, step, h0_ref[...], unroll=unroll)


def encoder_rnn_sequence(tokens, hidden, packed):
    """Run S encoder steps with one pallas_call.

    tokens: int32 (S,); hidden: (2, 1, H) f32 initial hidden.
    Returns (outputs (S, 1, 2H), hidden_new (2, 1, H)) — identical to calling
    EncoderRNN.forward() once per token with the hidden carried between calls.
    """
    emb = packed["embedding"]                              # (V, H) bf16
    V, H = emb.shape
    P = packed["b_hn"].shape[1]                            # round_up(2H, 128)
    S = tokens.shape[0]

    tokens = jnp.clip(tokens.astype(jnp.int32), 0, V - 1)  # guard the gather index

    # ---- Input path hoisted out of the recurrence: one batched matmul in XLA ----
    # (embarrassingly parallel over S; XLA shards/tiles it as it likes — incl. v7x's 2 TCs)
    x = jnp.take(emb, tokens, axis=0)                      # (S, H) bf16 embedding gather
    gi = jnp.dot(x, packed["w_in"],
                 preferred_element_type=jnp.float32) + packed["gi_bias"]   # (S, 3P) f32

    h0 = jnp.zeros((1, P), jnp.float32)
    h0 = h0.at[:, :2 * H].set(hidden.astype(jnp.float32).reshape(1, 2 * H))

    kernel = functools.partial(_bigru_recurrence_kernel,
                               seq_len=S, padded_width=P, unroll=(S <= 32))

    # Everything is single-buffered (no grid), so the VMEM need is just the sum
    # of the resident buffers; add margin and cap below v7x's 64 MiB physical.
    need = (S * 3 * P * 4          # gi
            + P * 3 * P * 2        # w_hid (bf16)
            + S * P * 4            # output slab
            + 16 * P * 4)          # h0, b_hn, slack
    vmem_limit = int(min(max(2 * need + (1 << 20), 4 << 20), 64 << 20))

    out = pl.pallas_call(
        kernel,
        out_shape=jax.ShapeDtypeStruct((S, P), jnp.float32),
        in_specs=[pl.BlockSpec(memory_space=pltpu.MemorySpace.VMEM)] * 4,
        out_specs=pl.BlockSpec(memory_space=pltpu.MemorySpace.VMEM),
        compiler_params=pltpu.CompilerParams(vmem_limit_bytes=vmem_limit),
    )(gi, h0, packed["w_hid"], packed["b_hn"])

    outputs = out[:, :2 * H].reshape(S, 1, 2 * H)
    hidden_new = out[S - 1, :2 * H].reshape(2, 1, H)       # [h_fwd_final; h_bwd_final]
    return outputs, hidden_new


def encoder_rnn_forward(token, hidden, packed):
    """Exact analogue of EncoderRNN.forward: one token, returns ((1,1,2H), (2,1,H))."""
    outputs, hidden_new = encoder_rnn_sequence(token.reshape(1), hidden, packed)
    return outputs.reshape(1, 1, -1), hidden_new


def init_params(key, input_size, hidden_size):
    """torch-layout parameters (f32): embedding (V,H); per-direction GRU weights."""
    H = hidden_size
    k = jax.random.split(key, 5)
    bound = 1.0 / jnp.sqrt(H)
    return {
        "embedding": jax.random.normal(k[0], (input_size, H), jnp.float32),
        "w_ih": jax.random.uniform(k[1], (2, 3 * H, H), jnp.float32, -bound, bound),
        "w_hh": jax.random.uniform(k[2], (2, 3 * H, H), jnp.float32, -bound, bound),
        "b_ih": jax.random.uniform(k[3], (2, 3 * H), jnp.float32, -bound, bound),
        "b_hh": jax.random.uniform(k[4], (2, 3 * H), jnp.float32, -bound, bound),
    }


def pack_params(params):
    """Repack torch-layout GRU params into the fused, lane-aligned kernel layout.

    Layout: 3 gate blocks [r | z | n], each padded to P = round_up(2H, 128)
    lanes; within a block directions are packed [fwd | bwd] in the first 2H
    lanes (rest zero).  The hidden weights are block-diagonal so
    [h_fwd|h_bwd|0] @ W_hid yields both directions' gate pre-activations in
    one matmul.  b_ih (all gates) and b_hh (r/z gates) are folded into the
    GI bias; only the n-gate hidden bias stays separate (it is scaled by r).
    """
    emb, w_ih, w_hh = params["embedding"], params["w_ih"], params["w_hh"]
    b_ih, b_hh = params["b_ih"], params["b_hh"]
    H = emb.shape[1]
    P = max(128, ((2 * H + 127) // 128) * 128)

    w_in = jnp.zeros((H, 3 * P), jnp.float32)
    gi_bias = jnp.zeros((1, 3 * P), jnp.float32)
    w_hid = jnp.zeros((P, 3 * P), jnp.float32)
    b_hn = jnp.zeros((1, P), jnp.float32)

    for g in range(3):                                     # r, z, n
        for d in range(2):                                 # fwd, bwd
            c0 = g * P + d * H
            w_in = w_in.at[:, c0:c0 + H].set(w_ih[d, g * H:(g + 1) * H, :].T)
            bias = b_ih[d, g * H:(g + 1) * H]
            if g < 2:                                      # fold r/z hidden bias into GI
                bias = bias + b_hh[d, g * H:(g + 1) * H]
            gi_bias = gi_bias.at[0, c0:c0 + H].set(bias)
            w_hid = w_hid.at[d * H:(d + 1) * H, c0:c0 + H].set(
                w_hh[d, g * H:(g + 1) * H, :].T)
    for d in range(2):
        b_hn = b_hn.at[0, d * H:(d + 1) * H].set(b_hh[d, 2 * H:3 * H])

    return {
        "embedding": emb.astype(jnp.bfloat16),
        "w_in": w_in.astype(jnp.bfloat16),
        "w_hid": w_hid.astype(jnp.bfloat16),
        "gi_bias": gi_bias.astype(jnp.float32),
        "b_hn": b_hn.astype(jnp.float32),
    }


def _reference_sequence(tokens, hidden, params):
    """Pure-JAX reference: repeated torch.nn.GRU(bidirectional, seq_len=1) steps.

    Matches the kernel's quantization (bf16 matmul inputs, f32 accumulation/gates).
    """
    H = params["embedding"].shape[1]
    emb_q = params["embedding"].astype(jnp.bfloat16).astype(jnp.float32)
    w_ih_q = params["w_ih"].astype(jnp.bfloat16).astype(jnp.float32)
    w_hh_q = params["w_hh"].astype(jnp.bfloat16).astype(jnp.float32)
    b_ih, b_hh = params["b_ih"], params["b_hh"]

    h = hidden[:, 0, :]                                    # (2, H)
    outs = []
    for t in range(tokens.shape[0]):
        x = emb_q[tokens[t]][None, :]                      # (1, H)
        new_h = []
        for d in range(2):
            hd = h[d][None, :]
            hq = hd.astype(jnp.bfloat16).astype(jnp.float32)
            gi = x @ w_ih_q[d].T + b_ih[d]
            gh = hq @ w_hh_q[d].T + b_hh[d]
            r = jax.nn.sigmoid(gi[:, :H] + gh[:, :H])
            z = jax.nn.sigmoid(gi[:, H:2 * H] + gh[:, H:2 * H])
            n = jnp.tanh(gi[:, 2 * H:] + r * gh[:, 2 * H:])
            new_h.append(((1.0 - z) * n + z * hd)[0])
        h = jnp.stack(new_h, axis=0)
        outs.append(jnp.concatenate(new_h, axis=-1))
    return jnp.stack(outs, axis=0)[:, None, :], h[:, None, :]


if __name__ == "__main__":
    vocab = 16          # input_size
    hidden_size = 32
    seq_len = 8

    key = jax.random.PRNGKey(0)
    pkey, tkey = jax.random.split(key, 2)
    params = init_params(pkey, vocab, hidden_size)
    packed = pack_params(params)

    tokens = jax.random.randint(tkey, (seq_len,), 0, vocab, dtype=jnp.int32)
    hidden0 = jnp.zeros((2, 1, hidden_size), jnp.float32)   # EncoderRNN.initHidden()

    seq_fn = jax.jit(encoder_rnn_sequence)
    step_fn = jax.jit(encoder_rnn_forward)

    # Single step: exact analogue of EncoderRNN.forward(input, hidden).
    out1, hid1 = step_fn(tokens[:1], hidden0, packed)
    # Full sequence in one pallas_call (== looping forward() with carried hidden).
    outs, hid_final = seq_fn(tokens, hidden0, packed)
    jax.block_until_ready((out1, hid1, outs, hid_final))

    assert out1.shape == (1, 1, 2 * hidden_size)
    assert hid1.shape == (2, 1, hidden_size)
    assert outs.shape == (seq_len, 1, 2 * hidden_size)
    assert hid_final.shape == (2, 1, hidden_size)

    ref_outs, ref_hid = _reference_sequence(tokens, hidden0, params)
    assert jnp.allclose(outs, ref_outs, atol=5e-3), "sequence output mismatch"
    assert jnp.allclose(hid_final, ref_hid, atol=5e-3), "final hidden mismatch"
    assert jnp.allclose(out1, ref_outs[:1], atol=5e-3), "single-step output mismatch"
    assert jnp.allclose(hid1, outs[0].reshape(2, 1, hidden_size), atol=1e-5), \
        "single-step / sequence inconsistency"

    print("KERNEL_OK")
</pallas_src>

<mosaic_0001>
module attributes {stable_mosaic.version = 11 : i64} {
  func.func @_bigru_recurrence_kernel(%arg0: memref<1x384xf32, #tpu.memory_space<vmem>>, %arg1: memref<1x128xf32, #tpu.memory_space<vmem>>, %arg2: memref<128x384xbf16, #tpu.memory_space<vmem>>, %arg3: memref<1x128xf32, #tpu.memory_space<vmem>>, %arg4: memref<1x128xf32, #tpu.memory_space<vmem>>) attributes {dimension_semantics = [], scalar_prefetch = 0 : i64, scratch_operands = 0 : i64, tpu.core_type = #tpu.core_type<tc>} {
    %c0 = arith.constant 0 : index
    %c0_0 = arith.constant 0 : index
    %0 = vector.load %arg3[%c0, %c0_0] : memref<1x128xf32, #tpu.memory_space<vmem>>, vector<1x128xf32>
    %c0_1 = arith.constant 0 : index
    %c0_2 = arith.constant 0 : index
    %1 = vector.load %arg1[%c0_1, %c0_2] : memref<1x128xf32, #tpu.memory_space<vmem>>, vector<1x128xf32>
    %c0_i32 = arith.constant 0 : i32
    %2 = arith.index_cast %c0_i32 : i32 to index
    %c0_3 = arith.constant 0 : index
    %3 = vector.load %arg0[%2, %c0_3] : memref<1x384xf32, #tpu.memory_space<vmem>>, vector<1x384xf32>
    %4 = arith.truncf %1 : vector<1x128xf32> to vector<1x128xbf16>
    %c0_4 = arith.constant 0 : index
    %c0_5 = arith.constant 0 : index
    %5 = vector.load %arg2[%c0_4, %c0_5] : memref<128x384xbf16, #tpu.memory_space<vmem>>, vector<128x384xbf16>
    %cst = arith.constant dense<0.000000e+00> : vector<1x384xf32>
    %6 = tpu.matmul %4, %5, %cst {dimension_numbers = #tpu.dot_dimension_numbers<[1], [0], [0], [1], [0, 0, 1, 1], [], []>} : vector<1x128xbf16>, vector<128x384xbf16>, vector<1x384xf32> -> vector<1x384xf32>
    %7 = vector.extract_strided_slice %3 {offsets = [0, 0], sizes = [1, 128], strides = [1, 1]} : vector<1x384xf32> to vector<1x128xf32>
    %8 = vector.extract_strided_slice %6 {offsets = [0, 0], sizes = [1, 128], strides = [1, 1]} : vector<1x384xf32> to vector<1x128xf32>
    %9 = arith.addf %7, %8 : vector<1x128xf32>
    %10 = arith.negf %9 : vector<1x128xf32>
    %11 = math.exp %10 : vector<1x128xf32>
    %cst_6 = arith.constant 1.000000e+00 : f32
    %12 = vector.broadcast %cst_6 : f32 to vector<1x128xf32>
    %13 = arith.addf %12, %11 : vector<1x128xf32>
    %14 = arith.divf %12, %13 : vector<1x128xf32>
    %15 = vector.extract_strided_slice %3 {offsets = [0, 128], sizes = [1, 128], strides = [1, 1]} : vector<1x384xf32> to vector<1x128xf32>
    %16 = vector.extract_strided_slice %6 {offsets = [0, 128], sizes = [1, 128], strides = [1, 1]} : vector<1x384xf32> to vector<1x128xf32>
    %17 = arith.addf %15, %16 : vector<1x128xf32>
    %18 = arith.negf %17 : vector<1x128xf32>
    %19 = math.exp %18 : vector<1x128xf32>
    %cst_7 = arith.constant 1.000000e+00 : f32
    %20 = vector.broadcast %cst_7 : f32 to vector<1x128xf32>
    %21 = arith.addf %20, %19 : vector<1x128xf32>
    %22 = arith.divf %20, %21 : vector<1x128xf32>
    %23 = vector.extract_strided_slice %3 {offsets = [0, 256], sizes = [1, 128], strides = [1, 1]} : vector<1x384xf32> to vector<1x128xf32>
    %24 = vector.extract_strided_slice %6 {offsets = [0, 256], sizes = [1, 128], strides = [1, 1]} : vector<1x384xf32> to vector<1x128xf32>
    %25 = arith.addf %24, %0 : vector<1x128xf32>
    %26 = arith.mulf %14, %25 : vector<1x128xf32>
    %27 = arith.addf %23, %26 : vector<1x128xf32>
    %28 = math.tanh %27 : vector<1x128xf32>
    %cst_8 = arith.constant 1.000000e+00 : f32
    %29 = vector.broadcast %cst_8 : f32 to vector<1x128xf32>
    %30 = arith.subf %29, %22 : vector<1x128xf32>
    %31 = arith.mulf %30, %28 : vector<1x128xf32>
    %32 = arith.mulf %22, %1 : vector<1x128xf32>
    %33 = arith.addf %31, %32 : vector<1x128xf32>
    %34 = arith.index_cast %c0_i32 : i32 to index
    %c0_9 = arith.constant 0 : index
    %35 = vector.load %arg4[%34, %c0_9] : memref<1x128xf32, #tpu.memory_space<vmem>>, vector<1x128xf32>
    tpu.vector_store %arg4[%34, %c0_9], %33 {strides = array<i32>} : memref<1x128xf32, #tpu.memory_space<vmem>>, vector<1x128xf32>,
    %c1_i32 = arith.constant 1 : i32
    return
  }
}

</mosaic_0001>

<llo_original>
// kernel: squeeze.1
$region0: #{squeeze.1}
  %s0 = inlined_call_operand.vmem [shape: f32[64], index: 0, kind: input, shape index: {}]
  %s1 = inlined_call_operand.hbm [shape: f32[2,1,32], index: 1, kind: output, shape index: {}]
  $region1: #{squeeze.1} parent=0
    #allocation0 [shape = 'u8[1024]{0}', space=vmem, size = 0x400, scoped, tag = 'operand span for operand 1']
    #allocation1 [shape = 's32[1]{0}', space=sflag, size = 0x4, scoped, tag = 'scoped memory for squeeze.1']
    #allocation2 [shape = 'u8[4096]{0}', space=vmem, size = 0x1000, scoped, tag = 'scoped mem for output reshape']
    #allocation3 [shape = 'u8[4096]{0}', space=vmem, size = 0x1000, scoped, tag = 'scoped mem for input reshape']
    %2 = vsyncpa [#allocation1], 0
    %s4 = sshllo.u32 0, 1
    %v5 = vld [vmem:[%s0] sm:%s4]
    %6 = vst [vmem:[#allocation3] sm:%s4] %v5
    %v7 = vld [vmem:[#allocation3] sm:$0x1]
    %vm8 = vcmask 261120
    %9 = vst.msk [vmem:[#allocation2] sm:$0x1] %vm8, %v7
    %v10 = vld [vmem:[#allocation3] sm:$0x1]
    %11 = vrot.lane.b32.xlu0 %v10, 96
    %v12 = vpop.permute.xlu0 %11
    %vm13 = vcmask 261120
    %s14 = scalar_lea.vmem [#allocation2], 1
    %15 = vst.msk [vmem:[%s14] sm:$0x1] %vm13, %v12
    %s17 = sshllo.u32 0, 2
    %v19 = vld [vmem:[#allocation2] sm:%s17]
    %s20 = sshllo.u32 0, 2
    %21 = vst [vmem:[#allocation0] sm:%s20] %v19
    %s23 = ssub.s32 32, 32
    %24 = vsyncadd [#allocation1], %s23
    %s26 = sshll.u32 [#allocation0], 4
    %s27 = int_to_ptr.vmem [resolvable:$true] %s26
    %29 = dma.vmem_to_hbm [thread:$0]  %s27, 32, %s1, [#allocation1]
    %30 = dma.done [#allocation1], 32
    %31 = vsyncpa [#allocation1], 1

// kernel: encoder_rnn_forward.1
$region0: #{encoder_rnn_forward.1}
  #allocation0 [shape = 'u32[]', space=smem, size = 0x4, offset = 0x4, fixed_abs, tag = 'smem constant byte address 0x4 - core index']
  #allocation1 [shape = 'u32[144,128]{1,0:T(1,128)}', space=vmem, size = 0x12000, scoped, tag = 'internal scratch']
  %s0 = inlined_call_operand.vmem [shape: f32[1,384], index: 0, kind: input, shape index: {}]
  %s1 = inlined_call_operand.vmem [shape: f32[1,128], index: 1, kind: input, shape index: {}]
  %s2 = inlined_call_operand.hbm [shape: bf16[128,384], index: 2, kind: input, shape index: {}]
  %s3 = inlined_call_operand.vmem [shape: f32[1,128], index: 3, kind: input, shape index: {}]
  %s4 = inlined_call_operand.vmem [shape: f32[1,128], index: 4, kind: output, shape index: {}]
  %s5 = sld [smem:[#allocation0]]
  $region30: #{encoder_rnn_forward.1} parent=0
    _
  %s7 = ssub.s32 1, %s5
  %s8 = scalar_select 0, %s7, %s5
  $region1: #{encoder_rnn_forward.1} parent=0
    #allocation2 [shape = 'u8[98304]{0}', space=vmem, size = 0x18000, scoped, tag = 'input window, operand 2, single buffered']
    #allocation3 [shape = 's32[1]{0}', space=sflag, size = 0x4, scoped, tag = 'scoped memory for encoder_rnn_forward.1']
    %9 = vsyncpa [#allocation3], 0
    // Predicated region
    $region2: #{encoder_rnn_forward.1} parent=1 // pred_check
      _
    $region3: #{encoder_rnn_forward.1} parent=1 // pred_check_branch
      %11 = sbr.rel (0) target = $region5
    $region4: #{encoder_rnn_forward.1} parent=1 // pred_region
      _
    $region5: #{encoder_rnn_forward.1} parent=1 // pred_fallthru
      _
    // Predicated region
    $region6: #{encoder_rnn_forward.1} parent=1 // pred_check
      _
    $region7: #{encoder_rnn_forward.1} parent=1 // pred_check_branch
      %13 = sbr.rel (0) target = $region9
    $region8: #{encoder_rnn_forward.1} parent=1 // pred_region
      _
    $region9: #{encoder_rnn_forward.1} parent=1 // pred_fallthru
      _
    // Predicated region
    $region10: #{encoder_rnn_forward.1} parent=1 // pred_check
      _
    $region11: #{encoder_rnn_forward.1} parent=1 // pred_check_branch
      %15 = sbr.rel (0) target = $region13
    $region12: #{encoder_rnn_forward.1} parent=1 // pred_region
      %s17 = ssub.s32 3072, 3072
      %18 = vsyncadd [#allocation3], %s17
      %s19 = sshll.u32 [#allocation2], 4
      %s20 = int_to_ptr.vmem [resolvable:$true] %s19
      %25 = dma.hbm_to_vmem [thread:$0]  %s2, 3072, %s20, [#allocation3], 192, 192, 12
    $region13: #{encoder_rnn_forward.1} parent=1 // pred_fallthru
      _
    // Predicated region
    $region14: #{encoder_rnn_forward.1} parent=1 // pred_check
      _
    $region15: #{encoder_rnn_forward.1} parent=1 // pred_check_branch
      %27 = sbr.rel (0) target = $region17
    $region16: #{encoder_rnn_forward.1} parent=1 // pred_region
      _
    $region17: #{encoder_rnn_forward.1} parent=1 // pred_fallthru
      _
    // Predicated region
    $region18: #{encoder_rnn_forward.1} parent=1 // pred_check
      _
    $region19: #{encoder_rnn_forward.1} parent=1 // pred_check_branch
      %29 = sbr.rel (0) target = $region21
    $region20: #{encoder_rnn_forward.1} parent=1 // pred_region
      %30 = dma.done [#allocation3], 3072
    $region21: #{encoder_rnn_forward.1} parent=1 // pred_fallthru
      _
    %v32 = vld [vmem:[%s3] sm:$0x1]
    %v33 = vld [vmem:[%s1] sm:$0x1]
    %v34 = vld [vmem:[%s0] sm:$0x7]
    %v35 = vpack.c.bf16 %v33, %v33
    %v36 = vld [vmem:[#allocation2] sm:$0xff]
    %v37 = vld [vmem:[#allocation2 + $0x8] sm:$0xf]
    %v38 = vld [vmem:[#allocation2 + $0xc] sm:$0xff]
    %v39 = vld [vmem:[#allocation2 + $0x14] sm:$0xf]
    %v40 = vld [vmem:[#allocation2 + $0x18] sm:$0xff]
    %v41 = vld [vmem:[#allocation2 + $0x20] sm:$0xf]
    %v42 = vld [vmem:[#allocation2 + $0x24] sm:$0xff]
    %v43 = vld [vmem:[#allocation2 + $0x2c] sm:$0xf]
    %v44 = vld [vmem:[#allocation2 + $0x30] sm:$0xff]
    %v45 = vld [vmem:[#allocation2 + $0x38] sm:$0xf]
    %v46 = vld [vmem:[#allocation2 + $0x3c] sm:$0xff]
    %v47 = vld [vmem:[#allocation2 + $0x44] sm:$0xf]
    %v48 = vld [vmem:[#allocation2 + $0x48] sm:$0xff]
    %v49 = vld [vmem:[#allocation2 + $0x50] sm:$0xf]
    %v50 = vld [vmem:[#allocation2 + $0x54] sm:$0xff]
    %v51 = vld [vmem:[#allocation2 + $0x5c] sm:$0xf]
    %v52 = vld [vmem:[#allocation2 + $0x60] sm:$0xff]
    %v53 = vld [vmem:[#allocation2 + $0x68] sm:$0xf]
    %v54 = vld [vmem:[#allocation2 + $0x6c] sm:$0xff]
    %v55 = vld [vmem:[#allocation2 + $0x74] sm:$0xf]
    %v56 = vld [vmem:[#allocation2 + $0x78] sm:$0xff]
    %v57 = vld [vmem:[#allocation2 + $0x80] sm:$0xf]
    %v58 = vld [vmem:[#allocation2 + $0x84] sm:$0xff]
    %v59 = vld [vmem:[#allocation2 + $0x8c] sm:$0xf]
    %v60 = vld [vmem:[#allocation2 + $0x90] sm:$0xff]
    %v61 = vld [vmem:[#allocation2 + $0x98] sm:$0xf]
    %v62 = vld [vmem:[#allocation2 + $0x9c] sm:$0xff]
    %v63 = vld [vmem:[#allocation2 + $0xa4] sm:$0xf]
    %v64 = vld [vmem:[#allocation2 + $0xa8] sm:$0xff]
    %v65 = vld [vmem:[#allocation2 + $0xb0] sm:$0xf]
    %v66 = vld [vmem:[#allocation2 + $0xb4] sm:$0xff]
    %v67 = vld [vmem:[#allocation2 + $0xbc] sm:$0xf]
    %v100 = vunpack.c.l.b16 %v36
    %v101 = vunpack.c.h.b16 %v36
    %v102 = vunpack.c.l.b16 %v37
    %v103 = vunpack.c.l.b16 %v38
    %v104 = vunpack.c.h.b16 %v38
    %v105 = vunpack.c.l.b16 %v39
    %v106 = vunpack.c.l.b16 %v40
    %v107 = vunpack.c.h.b16 %v40
    %v108 = vunpack.c.l.b16 %v41
    %v109 = vunpack.c.l.b16 %v42
    %v110 = vunpack.c.h.b16 %v42
    %v111 = vunpack.c.l.b16 %v43
    %v112 = vunpack.c.l.b16 %v44
    %v113 = vunpack.c.h.b16 %v44
    %v114 = vunpack.c.l.b16 %v45
    %v115 = vunpack.c.l.b16 %v46
    %v116 = vunpack.c.h.b16 %v46
    %v117 = vunpack.c.l.b16 %v47
    %v118 = vunpack.c.l.b16 %v48
    %v119 = vunpack.c.h.b16 %v48
    %v120 = vunpack.c.l.b16 %v49
    %v121 = vunpack.c.l.b16 %v50
    %v122 = vunpack.c.h.b16 %v50
    %v123 = vunpack.c.l.b16 %v51
    %v124 = vunpack.c.l.b16 %v52
    %v125 = vunpack.c.h.b16 %v52
    %v126 = vunpack.c.l.b16 %v53
    %v127 = vunpack.c.l.b16 %v54
    %v128 = vunpack.c.h.b16 %v54
    %v129 = vunpack.c.l.b16 %v55
    %v130 = vunpack.c.l.b16 %v56
    %v131 = vunpack.c.h.b16 %v56
    %v132 = vunpack.c.l.b16 %v57
    %v133 = vunpack.c.l.b16 %v58
    %v134 = vunpack.c.h.b16 %v58
    %v135 = vunpack.c.l.b16 %v59
    %v136 = vunpack.c.l.b16 %v60
    %v137 = vunpack.c.h.b16 %v60
    %v138 = vunpack.c.l.b16 %v61
    %v139 = vunpack.c.l.b16 %v62
    %v140 = vunpack.c.h.b16 %v62
    %v141 = vunpack.c.l.b16 %v63
    %v142 = vunpack.c.l.b16 %v64
    %v143 = vunpack.c.h.b16 %v64
    %v144 = vunpack.c.l.b16 %v65
    %v145 = vunpack.c.l.b16 %v66
    %v146 = vunpack.c.h.b16 %v66
    %v147 = vunpack.c.l.b16 %v67
    %v148 = vpack.c.b16 %v103, %v100
    %v149 = vpack.c.b16 %v104, %v101
    %v150 = vpack.c.b16 %v105, %v102
    %v151 = vpack.c.b16 %v109, %v106
    %v152 = vpack.c.b16 %v110, %v107
    %v153 = vpack.c.b16 %v111, %v108
    %v154 = vpack.c.b16 %v115, %v112
    %v155 = vpack.c.b16 %v116, %v113
    %v156 = vpack.c.b16 %v117, %v114
    %v157 = vpack.c.b16 %v121, %v118
    %v158 = vpack.c.b16 %v122, %v119
    %v159 = vpack.c.b16 %v123, %v120
    %v160 = vpack.c.b16 %v127, %v124
    %v161 = vpack.c.b16 %v128, %v125
    %v162 = vpack.c.b16 %v129, %v126
    %v163 = vpack.c.b16 %v133, %v130
    %v164 = vpack.c.b16 %v134, %v131
    %v165 = vpack.c.b16 %v135, %v132
    %v166 = vpack.c.b16 %v139, %v136
    %v167 = vpack.c.b16 %v140, %v137
    %v168 = vpack.c.b16 %v141, %v138
    %v169 = vpack.c.b16 %v145, %v142
    %v170 = vpack.c.b16 %v146, %v143
    %v171 = vpack.c.b16 %v147, %v144
    %196 = vmatprep.subr.bf16.mxu0 %v149
    %197 = vmatpush1.bf16.msra.mxu0 %v148
    %198 = vmatprep.subr.bf16.mxu0 %v152
    %199 = vmatpush1.bf16.msra.mxu0 %v151
    %200 = vmatprep.subr.bf16.mxu0 %v155
    %201 = vmatpush1.bf16.msra.mxu0 %v154
    %202 = vmatprep.subr.bf16.mxu0 %v158
    %203 = vmatpush1.bf16.msra.mxu0 %v157
    %204 = vmatprep.subr.bf16.mxu0 %v161
    %205 = vmatpush1.bf16.msra.mxu0 %v160
    %206 = vmatprep.subr.bf16.mxu0 %v164
    %207 = vmatpush1.bf16.msra.mxu0 %v163
    %208 = vmatprep.subr.bf16.mxu0 %v167
    %209 = vmatpush1.bf16.msra.mxu0 %v166
    %210 = vmatprep.subr.bf16.mxu0 %v170
    %211 = vmatpush1.bf16.msra.mxu0 %v169
    %212 = vmatprep.subr.bf16.mxu0 0
    %213 = vmatpush1.bf16.msra.mxu0 0
    %214 = vmatprep.subr.bf16.mxu0 0
    %215 = vmatpush1.bf16.msra.mxu0 0
    %216 = vmatprep.subr.bf16.mxu0 0
    %217 = vmatpush1.bf16.msra.mxu0 0
    %218 = vmatprep.subr.bf16.mxu0 0
    %219 = vmatpush1.bf16.msra.mxu0 0
    %220 = vmatprep.subr.bf16.mxu0 0
    %221 = vmatpush1.bf16.msra.mxu0 0
    %222 = vmatprep.subr.bf16.mxu0 0
    %223 = vmatpush1.bf16.msra.mxu0 0
    %224 = vmatprep.subr.bf16.mxu0 0
    %225 = vmatpush1.bf16.msra.mxu0 0
    %226 = vmatprep.subr.bf16.mxu0 0
    %227 = vmatpush1.bf16.msra.mxu0 0
    %228 = vmatprep.mubr.bf16.mxu0 0
    %229 = vmatmul.mubr.bf16.gmra.mrb[0].mxu0 %v35
    %v230 = vpop.f32.mrb[0].mxu0
    %v231 = vadd.f32 0.0, %v230
    %v232 = vpop.f32.mrb[0].mxu0
    %v233 = vadd.f32 0.0, %v232
    %v234 = vpop.f32.mrb[0].mxu0
    %v235 = vpop.f32.mrb[0].mxu0
    %236 = vdwg.mxu0
    %237 = vmatprep.subr.bf16.mxu0 0
    %238 = vmatpush1.bf16.msra.mxu0 %v150
    %239 = vmatprep.subr.bf16.mxu0 0
    %240 = vmatpush1.bf16.msra.mxu0 %v153
    %241 = vmatprep.subr.bf16.mxu0 0
    %242 = vmatpush1.bf16.msra.mxu0 %v156
    %243 = vmatprep.subr.bf16.mxu0 0
    %244 = vmatpush1.bf16.msra.mxu0 %v159
    %245 = vmatprep.subr.bf16.mxu0 0
    %246 = vmatpush1.bf16.msra.mxu0 %v162
    %247 = vmatprep.subr.bf16.mxu0 0
    %248 = vmatpush1.bf16.msra.mxu0 %v165
    %249 = vmatprep.subr.bf16.mxu0 0
    %250 = vmatpush1.bf16.msra.mxu0 %v168
    %251 = vmatprep.subr.bf16.mxu0 0
    %252 = vmatpush1.bf16.msra.mxu0 %v171
    %253 = vmatprep.subr.bf16.mxu0 0
    %254 = vmatpush1.bf16.msra.mxu0 0
    %255 = vmatprep.subr.bf16.mxu0 0
    %256 = vmatpush1.bf16.msra.mxu0 0
    %257 = vmatprep.subr.bf16.mxu0 0
    %258 = vmatpush1.bf16.msra.mxu0 0
    %259 = vmatprep.subr.bf16.mxu0 0
    %260 = vmatpush1.bf16.msra.mxu0 0
    %261 = vmatprep.subr.bf16.mxu0 0
    %262 = vmatpush1.bf16.msra.mxu0 0
    %263 = vmatprep.subr.bf16.mxu0 0
    %264 = vmatpush1.bf16.msra.mxu0 0
    %265 = vmatprep.subr.bf16.mxu0 0
    %266 = vmatpush1.bf16.msra.mxu0 0
    %267 = vmatprep.subr.bf16.mxu0 0
    %268 = vmatpush1.bf16.msra.mxu0 0
    %269 = vmatprep.mubr.bf16.mxu0 0
    %270 = vmatmul.mubr.bf16.gmra.mrb[0].mxu0 %v35
    %v271 = vpop.f32.mrb[0].mxu0
    %v272 = vadd.f32 0.0, %v271
    %v273 = vpop.f32.mrb[0].mxu0
    %v274 = vpop.f32.mrb[0].mxu0
    %v275 = vpop.f32.mrb[0].mxu0
    %276 = vdwg.mxu0
    %v277 = vadd.f32 %v34, %v231
    %v278 = vxor.u32 %v277, 2147483648
    %v279 = vmul.f32 %v278, 1.442695
    %v280 = vpow.pop %v279
    %v281 = vadd.f32 %v280, 1.0
    %v282 = vrcp.pop %v281
    %v283 = vmul.f32 1.0, %v282
    %v285 = vrot.slane %v34, 1
    %v287 = vadd.f32 %v285, %v233
    %v288 = vxor.u32 %v287, 2147483648
    %v289 = vmul.f32 %v288, 1.442695
    %v290 = vpow.pop %v289
    %v291 = vadd.f32 %v290, 1.0
    %v292 = vrcp.pop %v291
    %v293 = vmul.f32 1.0, %v292
    %v294 = vadd.f32 %v272, %v32
    %v295 = vmul.f32 %v283, %v294
    %v296 = vrot.slane %v34, 2
    %v298 = vadd.f32 %v296, %v295
    %v299 = vtanh.pop %v298
    %v300 = vsub.f32 1.0, %v293
    %v301 = vmul.f32 %v300, %v299
    %v302 = vmul.f32 %v293, %v33
    %v303 = vadd.f32 %v301, %v302
    %304 = vst [vmem:[%s4] sm:$0x1] %v303
    // Predicated region
    $region22: #{encoder_rnn_forward.1} parent=1 // pred_check
      _
    $region23: #{encoder_rnn_forward.1} parent=1 // pred_check_branch
      %306 = sbr.rel (0) target = $region25
    $region24: #{encoder_rnn_forward.1} parent=1 // pred_region
      _
    $region25: #{encoder_rnn_forward.1} parent=1 // pred_fallthru
      _
    // Predicated region
    $region26: #{encoder_rnn_forward.1} parent=1 // pred_check
      _
    $region27: #{encoder_rnn_forward.1} parent=1 // pred_check_branch
      %308 = sbr.rel (0) target = $region29
    $region28: #{encoder_rnn_forward.1} parent=1 // pred_region
      _
    $region29: #{encoder_rnn_forward.1} parent=1 // pred_fallthru
      _
    %309 = vsyncpa [#allocation3], 1

</llo_original>
